<compile_context>
chip_gen: v7x
topology: tpu7x:2x2x1
jax: 0.10.0
libtpu: 0.0.40
codegen_flags: <defaults>
</compile_context>

<pallas_src>
import math

import jax
import jax.numpy as jnp
from jax.experimental import pallas as pl
from jax.experimental.pallas import tpu as pltpu

_LANE = 128
_SUBLANE = 8
_TARGET_BLOCK_BYTES = 4 * 1024 * 1024  # per block; pipeline footprint ~4x this


def _sd_mul_kernel(scale_ref, x_ref, o_ref):
    # scale_ref: (TILE_N, 1) per-row scale; x_ref / o_ref: (TILE_N, TILE_D).
    # Pure broadcast multiply — the kernel is HBM-bandwidth bound.
    o_ref[...] = x_ref[...] * scale_ref[...]


def _vmem_limit_bytes():
    """~3/4 of physical VMEM: ~96 MiB on v5e/v6e, ~48 MiB on v7x."""
    try:
        cap = int(pltpu.get_tpu_info().vmem_capacity_bytes)
    except Exception:  # pragma: no cover - conservative fallback
        cap = 128 * 1024 * 1024
    return (cap * 3) // 4


def _select_tiles(n, d, itemsize, target_bytes):
    """Pick (tile_n, tile_d).

    Prefer contiguous full-D row slabs (tile_n multiple of 8 or == n); only
    split D (multiple of 128) when even an 8-row slab exceeds the budget.
    """
    if n * d * itemsize <= target_bytes:
        return n, d  # whole array in one block
    rows_fit = target_bytes // max(1, d * itemsize)
    if rows_fit >= _SUBLANE:
        tile_n = min(n, (int(rows_fit) // _SUBLANE) * _SUBLANE)
        return tile_n, d
    tile_n = n if n < _SUBLANE else _SUBLANE
    lanes_fit = target_bytes // max(1, tile_n * itemsize)
    tile_d = max(_LANE, (int(lanes_fit) // _LANE) * _LANE)
    tile_d = min(tile_d, d)
    return tile_n, tile_d


def stochastic_depth(x, p, mode="row", training=True, seed=0):
    """JAX/Pallas equivalent of torchvision.ops.stochastic_depth on NCHW input."""
    if p < 0.0 or p > 1.0:
        raise ValueError(f"drop probability has to be between 0 and 1, got {p}")
    if mode not in ("row", "batch"):
        raise ValueError(f"mode has to be 'row' or 'batch', got {mode}")
    if not training or p == 0.0:
        return x

    survival = 1.0 - p
    n = x.shape[0]
    d = int(math.prod(x.shape[1:]))
    itemsize = x.dtype.itemsize

    # --- per-row keep/scale, computed once outside the tiled kernel ---------
    key = jax.random.PRNGKey(seed)
    if mode == "row":
        keep = jax.random.bernoulli(key, survival, (n, 1))
    else:  # "batch": one decision shared by every row
        keep = jnp.broadcast_to(jax.random.bernoulli(key, survival, (1, 1)), (n, 1))
    if survival > 0.0:
        scale = keep.astype(jnp.float32) * jnp.float32(1.0 / survival)
    else:  # p == 1.0: everything dropped; avoid 0 * inf = NaN.
        scale = jnp.zeros((n, 1), jnp.float32)
    scale = scale.astype(x.dtype)  # multiply in the input's native dtype

    x2 = x.reshape(n, d)

    vmem_limit = _vmem_limit_bytes()
    target = min(_TARGET_BLOCK_BYTES, max(vmem_limit // 8, 512 * 1024))
    tile_n, tile_d = _select_tiles(n, d, itemsize, target)
    grid = (pl.cdiv(n, tile_n), pl.cdiv(d, tile_d))

    out = pl.pallas_call(
        _sd_mul_kernel,
        out_shape=jax.ShapeDtypeStruct((n, d), x.dtype),
        grid=grid,
        in_specs=[
            pl.BlockSpec((tile_n, 1), lambda i, j: (i, 0)),       # per-row scale
            pl.BlockSpec((tile_n, tile_d), lambda i, j: (i, j)),  # x row slab
        ],
        out_specs=pl.BlockSpec((tile_n, tile_d), lambda i, j: (i, j)),
        compiler_params=pltpu.CompilerParams(
            dimension_semantics=("parallel", "parallel"),
            vmem_limit_bytes=vmem_limit,
        ),
        cost_estimate=pl.CostEstimate(
            flops=n * d,
            bytes_accessed=2 * n * d * itemsize + n * itemsize,
            transcendentals=0,
        ),
    )(scale, x2)

    return out.reshape(x.shape)


class StochasticDepth:
    """Mirror of the PyTorch qmodule wrapper: forward just calls stochastic_depth."""

    def __init__(self, org_module=None, config=None):
        pass  # no parameters

    def __call__(self, x_in, *args, **kwargs):
        return stochastic_depth(x_in, *args, **kwargs)


if __name__ == "__main__":
    key = jax.random.PRNGKey(0)
    x = jax.random.normal(key, (2, 4, 16, 16), dtype=jnp.float32)

    mod = StochasticDepth(None)

    p = 0.3
    surv = 1.0 - p

    # Training, row mode: per-sample drop with 1/(1-p) rescale.
    out_row = jax.block_until_ready(mod(x, p, "row", True, seed=0))
    # Training, batch mode: single shared drop decision.
    out_batch = jax.block_until_ready(mod(x, p, "batch", True, seed=1))
    # Eval mode: identity.
    out_eval = jax.block_until_ready(mod(x, p, "row", False))
    # p == 1.0: guaranteed all-zeros (NaN guard).
    out_drop_all = jax.block_until_ready(mod(x, 1.0, "row", True, seed=2))
    # Non-multiple-of-128 feature dim exercises the ragged (masked) boundary.
    x_odd = jax.random.normal(jax.random.PRNGKey(3), (4, 3, 7, 7), jnp.float32)
    out_odd = jax.block_until_ready(mod(x_odd, p, "row", True, seed=4))

    # Each row is either zeroed or an exact x/(1-p) copy.
    for i in range(x.shape[0]):
        row = out_row[i]
        is_zero = bool(jnp.allclose(row, 0.0))
        is_kept = bool(jnp.allclose(row, x[i] / surv, rtol=1e-5, atol=1e-5))
        assert is_zero or is_kept, "row-mode output is neither dropped nor scaled copy"

    # Batch mode: one shared decision for the whole batch.
    all_zero = bool(jnp.allclose(out_batch, 0.0))
    all_kept = bool(jnp.allclose(out_batch, x / surv, rtol=1e-5, atol=1e-5))
    assert all_zero or all_kept, "batch-mode output is not a single shared decision"

    assert bool(jnp.allclose(out_eval, x)), "eval mode must be identity"
    assert bool(jnp.allclose(out_drop_all, 0.0)), "p=1.0 must produce zeros"

    # Ragged-D case: every row still either dropped or an exact scaled copy.
    for i in range(x_odd.shape[0]):
        row = out_odd[i]
        is_zero = bool(jnp.allclose(row, 0.0))
        is_kept = bool(jnp.allclose(row, x_odd[i] / surv, rtol=1e-5, atol=1e-5))
        assert is_zero or is_kept, "ragged-D row output is neither dropped nor scaled"

    print("KERNEL_OK")
</pallas_src>

<mosaic_0001>
module attributes {stable_mosaic.version = 11 : i64} {
  func.func @_sd_mul_kernel(%arg0: i32, %arg1: i32, %arg2: memref<2x1xf32, #tpu.memory_space<vmem>>, %arg3: memref<2x1024xf32, #tpu.memory_space<vmem>>, %arg4: memref<2x1024xf32, #tpu.memory_space<vmem>>) attributes {dimension_semantics = [#tpu.dimension_semantics<parallel>, #tpu.dimension_semantics<parallel>], iteration_bounds = array<i64: 1, 1>, scalar_prefetch = 0 : i64, scratch_operands = 0 : i64, tpu.core_type = #tpu.core_type<tc>, window_params = [{transform_indices = @transform_0, window_bounds = array<i64: 2, 1>}, {transform_indices = @transform_1, window_bounds = array<i64: 2, 1024>}, {transform_indices = @transform_2, window_bounds = array<i64: 2, 1024>}]} {
    %c0 = arith.constant 0 : index
    %c0_0 = arith.constant 0 : index
    %0 = vector.load %arg3[%c0, %c0_0] : memref<2x1024xf32, #tpu.memory_space<vmem>>, vector<2x1024xf32>
    %c0_1 = arith.constant 0 : index
    %c0_2 = arith.constant 0 : index
    %1 = vector.load %arg2[%c0_1, %c0_2] : memref<2x1xf32, #tpu.memory_space<vmem>>, vector<2x1xf32>
    %2 = vector.broadcast %1 : vector<2x1xf32> to vector<2x1024xf32>
    %3 = arith.mulf %0, %2 : vector<2x1024xf32>
    %c0_3 = arith.constant 0 : index
    %c0_4 = arith.constant 0 : index
    %4 = vector.load %arg4[%c0_3, %c0_4] : memref<2x1024xf32, #tpu.memory_space<vmem>>, vector<2x1024xf32>
    tpu.vector_store %arg4[%c0_3, %c0_4], %3 {strides = array<i32>} : memref<2x1024xf32, #tpu.memory_space<vmem>>, vector<2x1024xf32>,
    return
  }
  func.func @transform_0(%arg0: i32, %arg1: i32) -> (i32, i32) {
    %c0_i32 = arith.constant 0 : i32
    %c0_i32_0 = arith.constant 0 : i32
    return %arg0, %c0_i32 : i32, i32
  }
  func.func @transform_1(%arg0: i32, %arg1: i32) -> (i32, i32) {
    %c0_i32 = arith.constant 0 : i32
    return %arg0, %arg1 : i32, i32
  }
  func.func @transform_2(%arg0: i32, %arg1: i32) -> (i32, i32) {
    %c0_i32 = arith.constant 0 : i32
    return %arg0, %arg1 : i32, i32
  }
}

</mosaic_0001>

<llo_original>
// kernel: tpu_custom_call.1
$region0: #{tpu_custom_call.1}
  #allocation0 [shape = 'u32[]', space=smem, size = 0x4, offset = 0x4, fixed_abs, tag = 'smem constant byte address 0x4 - core index']
  #allocation1 [shape = 'u32[144,128]{1,0:T(1,128)}', space=vmem, size = 0x12000, scoped, tag = 'internal scratch']
  %s0 = inlined_call_operand.hbm [shape: f32[2,1], index: 0, kind: input, shape index: {}]
  %s1 = inlined_call_operand.hbm [shape: f32[2,1024], index: 1, kind: input, shape index: {}]
  %s2 = inlined_call_operand.hbm [shape: f32[2,1024], index: 2, kind: output, shape index: {}]
  %s3 = sld [smem:[#allocation0]]
  $region26: #{tpu_custom_call.1} parent=0
    _
  %s5 = ssub.s32 1, %s3
  %s6 = scalar_select 0, %s5, %s3
  $region1: #{tpu_custom_call.1} parent=0
    #allocation2 [shape = 'u8[1024]{0}', space=vmem, size = 0x400, scoped, tag = 'input window, operand 0, single buffered']
    #allocation3 [shape = 's32[1]{0}', space=sflag, size = 0x4, scoped, tag = 'scoped memory for tpu_custom_call.1']
    #allocation4 [shape = 's32[1]{0}', space=sflag, size = 0x4, scoped, tag = 'scoped memory for tpu_custom_call.1']
    #allocation5 [shape = 'u8[8192]{0}', space=vmem, size = 0x2000, scoped, tag = 'input window, operand 1, single buffered']
    #allocation6 [shape = 's32[1]{0}', space=sflag, size = 0x4, scoped, tag = 'scoped memory for tpu_custom_call.1']
    #allocation7 [shape = 'u8[8192]{0}', space=vmem, size = 0x2000, scoped, tag = 'output window, operand 0, single buffered']
    %7 = vsyncpa [#allocation3], 0
    %8 = vsyncpa [#allocation6], 0
    %9 = vsyncpa [#allocation4], 0
    // Predicated region
    $region2: #{tpu_custom_call.1} parent=1 // pred_check
      _
    $region3: #{tpu_custom_call.1} parent=1 // pred_check_branch
      %11 = sbr.rel (0) target = $region5
    $region4: #{tpu_custom_call.1} parent=1 // pred_region
      %s13 = ssub.s32 32, 32
      %14 = vsyncadd [#allocation3], %s13
      %s16 = sshll.u32 [#allocation2], 4
      %s17 = int_to_ptr.vmem [resolvable:$true] %s16
      %19 = dma.hbm_to_vmem [thread:$0]  %s0, 32, %s17, [#allocation3]
    $region5: #{tpu_custom_call.1} parent=1 // pred_fallthru
      _
    // Predicated region
    $region6: #{tpu_custom_call.1} parent=1 // pred_check
      _
    $region7: #{tpu_custom_call.1} parent=1 // pred_check_branch
      %21 = sbr.rel (0) target = $region9
    $region8: #{tpu_custom_call.1} parent=1 // pred_region
      %s23 = ssub.s32 256, 256
      %24 = vsyncadd [#allocation6], %s23
      %s26 = sshll.u32 [#allocation5], 4
      %s27 = int_to_ptr.vmem [resolvable:$true] %s26
      %29 = dma.hbm_to_vmem [thread:$0]  %s1, 256, %s27, [#allocation6]
    $region9: #{tpu_custom_call.1} parent=1 // pred_fallthru
      _
    // Predicated region
    $region10: #{tpu_custom_call.1} parent=1 // pred_check
      _
    $region11: #{tpu_custom_call.1} parent=1 // pred_check_branch
      %31 = sbr.rel (0) target = $region13
    $region12: #{tpu_custom_call.1} parent=1 // pred_region
      %32 = dma.done [#allocation3], 32
    $region13: #{tpu_custom_call.1} parent=1 // pred_fallthru
      _
    // Predicated region
    $region14: #{tpu_custom_call.1} parent=1 // pred_check
      _
    $region15: #{tpu_custom_call.1} parent=1 // pred_check_branch
      %34 = sbr.rel (0) target = $region17
    $region16: #{tpu_custom_call.1} parent=1 // pred_region
      %35 = dma.done [#allocation6], 256
    $region17: #{tpu_custom_call.1} parent=1 // pred_fallthru
      _
    %v36 = vld [vmem:[#allocation5] sm:$0xff]
    %v37 = vld [vmem:[#allocation5 + $0x8] sm:$0xff]
    %v38 = vld [vmem:[#allocation2] sm:$0x3]
    %40 = vset.pattern.permute.xlu0 0
    %41 = vperm.xlu0 %40, %v38
    %v42 = vpop.permute.xlu0 %41
    %v44 = vunpack.c.l.s4 269488144
    %v45 = vunpack.c.0.s8 %v44
    %v46 = vlaneseq
    %v47 = vshrl.u32 %v46, 7
    %v48 = vsub.s32 %v45, %v47
    %v49 = vrot.slane %v42, %v48
    %v51 = vmul.f32 %v36, %v49
    %v52 = vmul.f32 %v37, %v49
    %53 = vst [vmem:[#allocation7] sm:$0xff] %v51
    %54 = vst [vmem:[#allocation7 + $0x8] sm:$0xff] %v52
    // Predicated region
    $region18: #{tpu_custom_call.1} parent=1 // pred_check
      _
    $region19: #{tpu_custom_call.1} parent=1 // pred_check_branch
      %56 = sbr.rel (0) target = $region21
    $region20: #{tpu_custom_call.1} parent=1 // pred_region
      %s58 = ssub.s32 256, 256
      %59 = vsyncadd [#allocation4], %s58
      %s61 = sshll.u32 [#allocation7], 4
      %s62 = int_to_ptr.vmem [resolvable:$true] %s61
      %64 = dma.vmem_to_hbm [thread:$0]  %s62, 256, %s2, [#allocation4]
    $region21: #{tpu_custom_call.1} parent=1 // pred_fallthru
      _
    // Predicated region
    $region22: #{tpu_custom_call.1} parent=1 // pred_check
      _
    $region23: #{tpu_custom_call.1} parent=1 // pred_check_branch
      %66 = sbr.rel (0) target = $region25
    $region24: #{tpu_custom_call.1} parent=1 // pred_region
      %67 = dma.done [#allocation4], 256
    $region25: #{tpu_custom_call.1} parent=1 // pred_fallthru
      _
    %68 = vsyncpa [#allocation3], 1
    %69 = vsyncpa [#allocation6], 1
    %70 = vsyncpa [#allocation4], 1

</llo_original>
